<compile_context>
chip_gen: v7x
topology: tpu7x:2x2x1
jax: 0.10.0
libtpu: 0.0.40
codegen_flags: <defaults>
</compile_context>

<pallas_src>
import functools
import jax
import jax.numpy as jnp
from jax.experimental import pallas as pl
from jax.experimental.pallas import tpu as pltpu

EPS = 1e-5


def _unet_inner_kernel(face_ref, pose_ref, wd_ref, wu_ref, consts_ref, out_ref):
    """Gridless single invocation; all refs resident in VMEM.

    face   : (B, F)        f32   face.view(B, input_nc*16)
    pose   : (B, F)        f32   pose.view(B, input_nc*16)
    wd     : (2F, 2I)      bf16  block-diag([wf, wp])
    wu     : (2I, O16)     bf16  up Linear weight (rows: [df ; dp])
    consts : (2+O16, P)    f32   row0[:2I]=[bf|bp], row1[:O16]=bu, rows2:[:,:O16]=Pbar
    out    : (B, O16+2F)   f32   [relu(instancenorm(up)) | face | pose] flattened
    """
    B, F = face_ref.shape
    two_i = wd_ref.shape[1]
    o16 = wu_ref.shape[1]

    face = face_ref[...]                                     # f32, reused for skip
    pose = pose_ref[...]

    # Fused "down" Linear (face+pose in one MXU pass, K=2F=128) + LeakyReLU(0.2).
    x = jnp.concatenate([face, pose], axis=1).astype(jnp.bfloat16)        # (B, 2F)
    down = jnp.dot(x, wd_ref[...], preferred_element_type=jnp.float32)    # (B, 2I)
    down = down + consts_ref[0:1, 0:two_i]
    down = jnp.where(down >= 0, down, 0.2 * down)             # f32 on VPU

    # Fused "up" Linear on cat([df, dp], 1).
    up = jnp.dot(down.astype(jnp.bfloat16), wu_ref[...],
                 preferred_element_type=jnp.float32)
    up = up + consts_ref[1:2, 0:o16]                          # (B, O16) f32

    # InstanceNorm2d over each channel's 16 flat columns via ONE dense
    # block-averaging matmul: [up ; up*up] @ Pbar -> [mean_full ; meansq_full].
    pbar = consts_ref[2:2 + o16, 0:o16]                       # (O16, O16) f32
    stacked = jnp.concatenate([up, up * up], axis=0)          # (2B, O16) f32 (keep f32)
    stats = jnp.dot(stacked, pbar, preferred_element_type=jnp.float32)    # (2B, O16)
    mean_full = stats[:B]
    meansq_full = stats[B:]
    var = jnp.maximum(meansq_full - mean_full * mean_full, 0.0)   # cancellation guard
    inv = jax.lax.rsqrt(var + EPS)
    up_out = jnp.maximum((up - mean_full) * inv, 0.0)         # upnorm + uprelu

    # Single-slab output: [up | face | pose], skip path from the ORIGINAL f32 refs.
    out_ref[:, 0:o16] = up_out
    out_ref[:, o16:o16 + F] = face
    out_ref[:, o16 + F:o16 + 2 * F] = pose


def pack_params(params, *, input_nc, inner_nc, outer_nc):
    """Host-side packing: block-diag down weight, up weight, one f32 constants slab."""
    F = input_nc * 16
    I = inner_nc
    O16 = outer_nc * 16
    two_i = 2 * I

    wd = jnp.zeros((2 * F, two_i), jnp.float32)
    wd = wd.at[:F, :I].set(params["wf"]).at[F:, I:].set(params["wp"])

    P = max(two_i, O16)
    consts = jnp.zeros((2 + O16, P), jnp.float32)
    consts = consts.at[0, :two_i].set(
        jnp.concatenate([params["bf"][0], params["bp"][0]]))
    consts = consts.at[1, :O16].set(params["bu"][0])
    ch = jnp.arange(O16) // 16
    pbar = (ch[:, None] == ch[None, :]).astype(jnp.float32) / 16.0   # (O16, O16)
    consts = consts.at[2:, :O16].set(pbar)

    return {
        "w_down": wd.astype(jnp.bfloat16),
        "w_up": params["wu"].astype(jnp.bfloat16),
        "consts": consts,           # f32: biases added post-accumulation, Pbar f32
    }


def unet_block_innermost(face, pose, packed, *, input_nc, inner_nc, outer_nc,
                         detach_face=False, detach_pose=False):
    """face, pose: (B, input_nc, 4, 4) f32 NCHW. Returns (B, outer_nc+2*input_nc, 4, 4)."""
    del detach_face, detach_pose  # autograd-only; no effect on forward values
    B = face.shape[0]
    F = input_nc * 16
    O16 = outer_nc * 16
    c_out = outer_nc + 2 * input_nc

    # NCHW -> (B, F) reshapes are free metadata; cast/concat happen in-kernel.
    face_flat = face.reshape(B, F)
    pose_flat = pose.reshape(B, F)

    vmem = pl.BlockSpec(memory_space=pltpu.MemorySpace.VMEM)
    out = pl.pallas_call(
        _unet_inner_kernel,
        out_shape=jax.ShapeDtypeStruct((B, c_out * 16), jnp.float32),
        in_specs=[vmem] * 5,
        out_specs=vmem,
    )(face_flat, pose_flat, packed["w_down"], packed["w_up"], packed["consts"])

    # Flat (B, c_out*16) == (B, c_out, 4, 4) with channels [up | face | pose]: free view.
    return out.reshape(B, c_out, 4, 4)


def unet_block_innermost_ref(face, pose, params, *, input_nc, inner_nc, outer_nc):
    """Pure-JAX reference mirroring the PyTorch forward (and the kernel's bf16 feeds)."""
    B = face.shape[0]
    q = lambda a: a.astype(jnp.bfloat16).astype(jnp.float32)  # bf16 quantize
    f = q(face.reshape(B, -1))
    p = q(pose.reshape(B, -1))
    df = f @ q(params["wf"]) + params["bf"]
    df = jnp.where(df >= 0, df, 0.2 * df)
    dp = p @ q(params["wp"]) + params["bp"]
    dp = jnp.where(dp >= 0, dp, 0.2 * dp)
    h = q(jnp.concatenate([df, dp], axis=1))
    up = h @ q(params["wu"]) + params["bu"]
    up = up.reshape(B, outer_nc, 4, 4)
    mean = up.mean(axis=(2, 3), keepdims=True)
    var = up.var(axis=(2, 3), keepdims=True)      # biased, like InstanceNorm2d
    up = (up - mean) * jax.lax.rsqrt(var + EPS)
    up = jnp.maximum(up, 0.0)
    return jnp.concatenate([up, face, pose], axis=1)


def make_params(key, input_nc, inner_nc, outer_nc):
    F = input_nc * 16
    O16 = outer_nc * 16
    ks = jax.random.split(key, 6)
    scale = 0.1
    return {
        "wf": scale * jax.random.normal(ks[0], (F, inner_nc), jnp.float32),
        "bf": scale * jax.random.normal(ks[1], (1, inner_nc), jnp.float32),
        "wp": scale * jax.random.normal(ks[2], (F, inner_nc), jnp.float32),
        "bp": scale * jax.random.normal(ks[3], (1, inner_nc), jnp.float32),
        # up Linear weight: rows [0:inner_nc] multiply df, rows [inner_nc:] multiply dp
        "wu": scale * jax.random.normal(ks[4], (2 * inner_nc, O16), jnp.float32),
        "bu": scale * jnp.ones((1, O16), jnp.float32),
    }


if __name__ == "__main__":
    # TODO(synk): outermost / middle UnetBlock variants use ConvTranspose2d with an
    # undefined padding `p` in the reference source; only the well-defined innermost
    # (Linear) branch is implemented here.
    B, input_nc, inner_nc, outer_nc = 2, 4, 32, 4
    key = jax.random.PRNGKey(0)
    kf, kp, kw = jax.random.split(key, 3)
    face = jax.random.normal(kf, (B, input_nc, 4, 4), jnp.float32)
    pose = jax.random.normal(kp, (B, input_nc, 4, 4), jnp.float32)
    params = make_params(kw, input_nc, inner_nc, outer_nc)
    packed = pack_params(params, input_nc=input_nc, inner_nc=inner_nc,
                         outer_nc=outer_nc)

    run = functools.partial(unet_block_innermost,
                            input_nc=input_nc, inner_nc=inner_nc, outer_nc=outer_nc)
    out = jax.block_until_ready(run(face, pose, packed,
                                    detach_face=True, detach_pose=False))

    ref = unet_block_innermost_ref(face, pose, params,
                                   input_nc=input_nc, inner_nc=inner_nc,
                                   outer_nc=outer_nc)
    assert out.shape == (B, outer_nc + 2 * input_nc, 4, 4), out.shape
    max_err = float(jnp.max(jnp.abs(out - ref)))
    assert max_err < 2e-2, max_err
    print("KERNEL_OK")
</pallas_src>

<mosaic_0001>
module attributes {stable_mosaic.version = 11 : i64} {
  func.func @_unet_inner_kernel(%arg0: memref<2x64xf32, #tpu.memory_space<vmem>>, %arg1: memref<2x64xf32, #tpu.memory_space<vmem>>, %arg2: memref<128x64xbf16, #tpu.memory_space<vmem>>, %arg3: memref<64x64xbf16, #tpu.memory_space<vmem>>, %arg4: memref<66x64xf32, #tpu.memory_space<vmem>>, %arg5: memref<2x192xf32, #tpu.memory_space<vmem>>) attributes {dimension_semantics = [], scalar_prefetch = 0 : i64, scratch_operands = 0 : i64, tpu.core_type = #tpu.core_type<tc>} {
    %c0 = arith.constant 0 : index
    %c0_0 = arith.constant 0 : index
    %0 = vector.load %arg0[%c0, %c0_0] : memref<2x64xf32, #tpu.memory_space<vmem>>, vector<2x64xf32>
    %c0_1 = arith.constant 0 : index
    %c0_2 = arith.constant 0 : index
    %1 = vector.load %arg1[%c0_1, %c0_2] : memref<2x64xf32, #tpu.memory_space<vmem>>, vector<2x64xf32>
    %2 = tpu.concatenate %0, %1 in 1 : vector<2x64xf32>, vector<2x64xf32> -> vector<2x128xf32>
    %3 = arith.truncf %2 : vector<2x128xf32> to vector<2x128xbf16>
    %c0_3 = arith.constant 0 : index
    %c0_4 = arith.constant 0 : index
    %4 = vector.load %arg2[%c0_3, %c0_4] : memref<128x64xbf16, #tpu.memory_space<vmem>>, vector<128x64xbf16>
    %cst = arith.constant dense<0.000000e+00> : vector<2x64xf32>
    %5 = tpu.matmul %3, %4, %cst {dimension_numbers = #tpu.dot_dimension_numbers<[1], [0], [0], [1], [0, 0, 1, 1], [], []>} : vector<2x128xbf16>, vector<128x64xbf16>, vector<2x64xf32> -> vector<2x64xf32>
    %c0_5 = arith.constant 0 : index
    %c0_6 = arith.constant 0 : index
    %6 = vector.load %arg4[%c0_5, %c0_6] : memref<66x64xf32, #tpu.memory_space<vmem>>, vector<1x64xf32>
    %7 = vector.broadcast %6 : vector<1x64xf32> to vector<2x64xf32>
    %8 = arith.addf %5, %7 : vector<2x64xf32>
    %cst_7 = arith.constant 0.000000e+00 : f32
    %9 = vector.broadcast %cst_7 : f32 to vector<2x64xf32>
    %10 = arith.cmpf oge, %8, %9 : vector<2x64xf32>
    %cst_8 = arith.constant 2.000000e-01 : f32
    %11 = vector.broadcast %cst_8 : f32 to vector<2x64xf32>
    %12 = arith.mulf %11, %8 : vector<2x64xf32>
    %13 = arith.select %10, %8, %12 : vector<2x64xi1>, vector<2x64xf32>
    %14 = arith.truncf %13 : vector<2x64xf32> to vector<2x64xbf16>
    %c0_9 = arith.constant 0 : index
    %c0_10 = arith.constant 0 : index
    %15 = vector.load %arg3[%c0_9, %c0_10] : memref<64x64xbf16, #tpu.memory_space<vmem>>, vector<64x64xbf16>
    %cst_11 = arith.constant dense<0.000000e+00> : vector<2x64xf32>
    %16 = tpu.matmul %14, %15, %cst_11 {dimension_numbers = #tpu.dot_dimension_numbers<[1], [0], [0], [1], [0, 0, 1, 1], [], []>} : vector<2x64xbf16>, vector<64x64xbf16>, vector<2x64xf32> -> vector<2x64xf32>
    %c1 = arith.constant 1 : index
    %c0_12 = arith.constant 0 : index
    %17 = vector.load %arg4[%c1, %c0_12] : memref<66x64xf32, #tpu.memory_space<vmem>>, vector<1x64xf32>
    %18 = vector.broadcast %17 : vector<1x64xf32> to vector<2x64xf32>
    %19 = arith.addf %16, %18 : vector<2x64xf32>
    %c2 = arith.constant 2 : index
    %c0_13 = arith.constant 0 : index
    %20 = vector.load %arg4[%c2, %c0_13] : memref<66x64xf32, #tpu.memory_space<vmem>>, vector<64x64xf32>
    %21 = arith.mulf %19, %19 : vector<2x64xf32>
    %22 = tpu.concatenate %19, %21 in 0 : vector<2x64xf32>, vector<2x64xf32> -> vector<4x64xf32>
    %cst_14 = arith.constant dense<0.000000e+00> : vector<4x64xf32>
    %23 = tpu.matmul %22, %20, %cst_14 {dimension_numbers = #tpu.dot_dimension_numbers<[1], [0], [0], [1], [0, 0, 1, 1], [], []>} : vector<4x64xf32>, vector<64x64xf32>, vector<4x64xf32> -> vector<4x64xf32>
    %24 = vector.extract_strided_slice %23 {offsets = [0, 0], sizes = [2, 64], strides = [1, 1]} : vector<4x64xf32> to vector<2x64xf32>
    %25 = vector.extract_strided_slice %23 {offsets = [2, 0], sizes = [2, 64], strides = [1, 1]} : vector<4x64xf32> to vector<2x64xf32>
    %26 = arith.mulf %24, %24 : vector<2x64xf32>
    %27 = arith.subf %25, %26 : vector<2x64xf32>
    %cst_15 = arith.constant 0.000000e+00 : f32
    %28 = vector.broadcast %cst_15 : f32 to vector<2x64xf32>
    %29 = arith.maximumf %27, %28 : vector<2x64xf32>
    %cst_16 = arith.constant 9.99999974E-6 : f32
    %30 = vector.broadcast %cst_16 : f32 to vector<2x64xf32>
    %31 = arith.addf %29, %30 : vector<2x64xf32>
    %32 = math.rsqrt %31 : vector<2x64xf32>
    %33 = arith.subf %19, %24 : vector<2x64xf32>
    %34 = arith.mulf %33, %32 : vector<2x64xf32>
    %cst_17 = arith.constant 0.000000e+00 : f32
    %35 = vector.broadcast %cst_17 : f32 to vector<2x64xf32>
    %36 = arith.maximumf %34, %35 : vector<2x64xf32>
    %c0_18 = arith.constant 0 : index
    %c0_19 = arith.constant 0 : index
    %37 = vector.load %arg5[%c0_18, %c0_19] : memref<2x192xf32, #tpu.memory_space<vmem>>, vector<2x64xf32>
    tpu.vector_store %arg5[%c0_18, %c0_19], %36 {strides = array<i32>} : memref<2x192xf32, #tpu.memory_space<vmem>>, vector<2x64xf32>,
    %c0_20 = arith.constant 0 : index
    %c64 = arith.constant 64 : index
    %38 = vector.load %arg5[%c0_20, %c64] : memref<2x192xf32, #tpu.memory_space<vmem>>, vector<2x64xf32>
    tpu.vector_store %arg5[%c0_20, %c64], %0 {strides = array<i32>} : memref<2x192xf32, #tpu.memory_space<vmem>>, vector<2x64xf32>,
    %c0_21 = arith.constant 0 : index
    %c128 = arith.constant 128 : index
    %39 = vector.load %arg5[%c0_21, %c128] : memref<2x192xf32, #tpu.memory_space<vmem>>, vector<2x64xf32>
    tpu.vector_store %arg5[%c0_21, %c128], %1 {strides = array<i32>} : memref<2x192xf32, #tpu.memory_space<vmem>>, vector<2x64xf32>,
    return
  }
}

</mosaic_0001>

<llo_original>
// kernel: tpu_custom_call.1
$region0: #{tpu_custom_call.1}
  #allocation0 [shape = 'u32[]', space=smem, size = 0x4, offset = 0x4, fixed_abs, tag = 'smem constant byte address 0x4 - core index']
  #allocation1 [shape = 'u32[144,128]{1,0:T(1,128)}', space=vmem, size = 0x12000, scoped, tag = 'internal scratch']
  %s0 = inlined_call_operand.vmem [shape: f32[2,64], index: 0, kind: input, shape index: {}]
  %s1 = inlined_call_operand.vmem [shape: f32[2,64], index: 1, kind: input, shape index: {}]
  %s2 = inlined_call_operand.vmem [shape: bf16[128,64], index: 2, kind: input, shape index: {}]
  %s3 = inlined_call_operand.vmem [shape: bf16[64,64], index: 3, kind: input, shape index: {}]
  %s4 = inlined_call_operand.vmem [shape: f32[66,64], index: 4, kind: input, shape index: {}]
  %s5 = inlined_call_operand.hbm [shape: f32[2,192], index: 5, kind: output, shape index: {}]
  %s6 = sld [smem:[#allocation0]]
  $region30: #{tpu_custom_call.1} parent=0
    _
  %s8 = ssub.s32 1, %s6
  %s9 = scalar_select 0, %s8, %s6
  $region1: #{tpu_custom_call.1} parent=0
    #allocation2 [shape = 'u8[2048]{0}', space=vmem, size = 0x800, scoped, tag = 'output window, operand 0, single buffered']
    #allocation3 [shape = 's32[1]{0}', space=sflag, size = 0x4, scoped, tag = 'scoped memory for tpu_custom_call.1']
    %10 = vsyncpa [#allocation3], 0
    // Predicated region
    $region2: #{tpu_custom_call.1} parent=1 // pred_check
      _
    $region3: #{tpu_custom_call.1} parent=1 // pred_check_branch
      %12 = sbr.rel (0) target = $region5
    $region4: #{tpu_custom_call.1} parent=1 // pred_region
      _
    $region5: #{tpu_custom_call.1} parent=1 // pred_fallthru
      _
    // Predicated region
    $region6: #{tpu_custom_call.1} parent=1 // pred_check
      _
    $region7: #{tpu_custom_call.1} parent=1 // pred_check_branch
      %14 = sbr.rel (0) target = $region9
    $region8: #{tpu_custom_call.1} parent=1 // pred_region
      _
    $region9: #{tpu_custom_call.1} parent=1 // pred_fallthru
      _
    // Predicated region
    $region10: #{tpu_custom_call.1} parent=1 // pred_check
      _
    $region11: #{tpu_custom_call.1} parent=1 // pred_check_branch
      %16 = sbr.rel (0) target = $region13
    $region12: #{tpu_custom_call.1} parent=1 // pred_region
      _
    $region13: #{tpu_custom_call.1} parent=1 // pred_fallthru
      _
    // Predicated region
    $region14: #{tpu_custom_call.1} parent=1 // pred_check
      _
    $region15: #{tpu_custom_call.1} parent=1 // pred_check_branch
      %18 = sbr.rel (0) target = $region17
    $region16: #{tpu_custom_call.1} parent=1 // pred_region
      _
    $region17: #{tpu_custom_call.1} parent=1 // pred_fallthru
      _
    // Predicated region
    $region18: #{tpu_custom_call.1} parent=1 // pred_check
      _
    $region19: #{tpu_custom_call.1} parent=1 // pred_check_branch
      %20 = sbr.rel (0) target = $region21
    $region20: #{tpu_custom_call.1} parent=1 // pred_region
      _
    $region21: #{tpu_custom_call.1} parent=1 // pred_fallthru
      _
    %v22 = vld [vmem:[%s0] sm:$0x3]
    %v23 = vld [vmem:[%s1] sm:$0x3]
    %25 = vrot.lane.b32.xlu0 %v23, 64
    %v26 = vpop.permute.xlu0 %25
    %vm28 = vcmask 523264
    %v29 = vsel %vm28, %v22, %v26
    %v30 = vpack.c.bf16 %v29, %v29
    %v31 = vld [vmem:[%s2] sm:$0xf]
    %v32 = vld [vmem:[%s2 + $0x4] sm:$0xf]
    %v33 = vld [vmem:[%s2 + $0x8] sm:$0xf]
    %v34 = vld [vmem:[%s2 + $0xc] sm:$0xf]
    %v35 = vld [vmem:[%s2 + $0x10] sm:$0xf]
    %v36 = vld [vmem:[%s2 + $0x14] sm:$0xf]
    %v37 = vld [vmem:[%s2 + $0x18] sm:$0xf]
    %v38 = vld [vmem:[%s2 + $0x1c] sm:$0xf]
    %v39 = vld [vmem:[%s2 + $0x20] sm:$0xf]
    %v40 = vld [vmem:[%s2 + $0x24] sm:$0xf]
    %v41 = vld [vmem:[%s2 + $0x28] sm:$0xf]
    %v42 = vld [vmem:[%s2 + $0x2c] sm:$0xf]
    %v43 = vld [vmem:[%s2 + $0x30] sm:$0xf]
    %v44 = vld [vmem:[%s2 + $0x34] sm:$0xf]
    %v45 = vld [vmem:[%s2 + $0x38] sm:$0xf]
    %v46 = vld [vmem:[%s2 + $0x3c] sm:$0xf]
    %v47 = vld [vmem:[%s4] sm:$0x1]
    %v48 = vlaneseq
    %v49 = vshrl.u32 %v48, 7
    %v50 = vsub.s32 0, %v49
    %v51 = vrot.slane %v47, %v50
    %v68 = vunpack.c.l.b16 %v31
    %v69 = vunpack.c.l.b16 %v32
    %v70 = vunpack.c.l.b16 %v33
    %v71 = vunpack.c.l.b16 %v34
    %v72 = vunpack.c.l.b16 %v35
    %v73 = vunpack.c.l.b16 %v36
    %v74 = vunpack.c.l.b16 %v37
    %v75 = vunpack.c.l.b16 %v38
    %v76 = vunpack.c.l.b16 %v39
    %v77 = vunpack.c.l.b16 %v40
    %v78 = vunpack.c.l.b16 %v41
    %v79 = vunpack.c.l.b16 %v42
    %v80 = vunpack.c.l.b16 %v43
    %v81 = vunpack.c.l.b16 %v44
    %v82 = vunpack.c.l.b16 %v45
    %v83 = vunpack.c.l.b16 %v46
    %v84 = vpack.c.b16 %v69, %v68
    %v85 = vpack.c.b16 %v71, %v70
    %v86 = vpack.c.b16 %v73, %v72
    %v87 = vpack.c.b16 %v75, %v74
    %v88 = vpack.c.b16 %v77, %v76
    %v89 = vpack.c.b16 %v79, %v78
    %v90 = vpack.c.b16 %v81, %v80
    %v91 = vpack.c.b16 %v83, %v82
    %100 = vmatprep.subr.bf16.mxu0 0
    %101 = vmatpush1.bf16.msra.mxu0 %v84
    %102 = vmatprep.subr.bf16.mxu0 0
    %103 = vmatpush1.bf16.msra.mxu0 %v85
    %104 = vmatprep.subr.bf16.mxu0 0
    %105 = vmatpush1.bf16.msra.mxu0 %v86
    %106 = vmatprep.subr.bf16.mxu0 0
    %107 = vmatpush1.bf16.msra.mxu0 %v87
    %108 = vmatprep.subr.bf16.mxu0 0
    %109 = vmatpush1.bf16.msra.mxu0 %v88
    %110 = vmatprep.subr.bf16.mxu0 0
    %111 = vmatpush1.bf16.msra.mxu0 %v89
    %112 = vmatprep.subr.bf16.mxu0 0
    %113 = vmatpush1.bf16.msra.mxu0 %v90
    %114 = vmatprep.subr.bf16.mxu0 0
    %115 = vmatpush1.bf16.msra.mxu0 %v91
    %116 = vmatprep.subr.bf16.mxu0 0
    %117 = vmatpush1.bf16.msra.mxu0 0
    %118 = vmatprep.subr.bf16.mxu0 0
    %119 = vmatpush1.bf16.msra.mxu0 0
    %120 = vmatprep.subr.bf16.mxu0 0
    %121 = vmatpush1.bf16.msra.mxu0 0
    %122 = vmatprep.subr.bf16.mxu0 0
    %123 = vmatpush1.bf16.msra.mxu0 0
    %124 = vmatprep.subr.bf16.mxu0 0
    %125 = vmatpush1.bf16.msra.mxu0 0
    %126 = vmatprep.subr.bf16.mxu0 0
    %127 = vmatpush1.bf16.msra.mxu0 0
    %128 = vmatprep.subr.bf16.mxu0 0
    %129 = vmatpush1.bf16.msra.mxu0 0
    %130 = vmatprep.subr.bf16.mxu0 0
    %131 = vmatpush1.bf16.msra.mxu0 0
    %132 = vmatprep.mubr.bf16.mxu0 0
    %133 = vmatmul.mubr.bf16.gmra.mrb[0].mxu0 %v30
    %v134 = vpop.f32.mrb[0].mxu0
    %v135 = vadd.f32 %v51, %v134
    %v136 = vpop.f32.mrb[0].mxu0
    %v137 = vpop.f32.mrb[0].mxu0
    %v138 = vpop.f32.mrb[0].mxu0
    %139 = vdwg.mxu0
    %vm140 = vcmp.ge.f32.partialorder %v135, 0.0
    %v141 = vmul.f32 %v135, 0.2
    %v142 = vsel %vm140, %v135, %v141
    %v143 = vpack.c.bf16 %v142, %v142
    %v144 = vld [vmem:[%s3] sm:$0xf]
    %v145 = vld [vmem:[%s3 + $0x4] sm:$0xf]
    %v146 = vld [vmem:[%s3 + $0x8] sm:$0xf]
    %v147 = vld [vmem:[%s3 + $0xc] sm:$0xf]
    %v148 = vld [vmem:[%s3 + $0x10] sm:$0xf]
    %v149 = vld [vmem:[%s3 + $0x14] sm:$0xf]
    %v150 = vld [vmem:[%s3 + $0x18] sm:$0xf]
    %v151 = vld [vmem:[%s3 + $0x1c] sm:$0xf]
    %v152 = vld [vmem:[%s4 + $0x1] sm:$0x1]
    %v153 = vlaneseq
    %v154 = vshrl.u32 %v153, 7
    %v155 = vsub.s32 0, %v154
    %v156 = vrot.slane %v152, %v155
    %v165 = vunpack.c.l.b16 %v144
    %v166 = vunpack.c.l.b16 %v145
    %v167 = vunpack.c.l.b16 %v146
    %v168 = vunpack.c.l.b16 %v147
    %v169 = vunpack.c.l.b16 %v148
    %v170 = vunpack.c.l.b16 %v149
    %v171 = vunpack.c.l.b16 %v150
    %v172 = vunpack.c.l.b16 %v151
    %v173 = vpack.c.b16 %v166, %v165
    %v174 = vpack.c.b16 %v168, %v167
    %v175 = vpack.c.b16 %v170, %v169
    %v176 = vpack.c.b16 %v172, %v171
    %v182 = vsel %vm28, %v143, 0
    %184 = vmatprep.subr.bf16.mxu0 0
    %185 = vmatpush1.bf16.msra.mxu0 %v173
    %186 = vmatprep.subr.bf16.mxu0 0
    %187 = vmatpush1.bf16.msra.mxu0 %v174
    %188 = vmatprep.subr.bf16.mxu0 0
    %189 = vmatpush1.bf16.msra.mxu0 %v175
    %190 = vmatprep.subr.bf16.mxu0 0
    %191 = vmatpush1.bf16.msra.mxu0 %v176
    %192 = vmatprep.subr.bf16.mxu0 0
    %193 = vmatpush1.bf16.msra.mxu0 0
    %194 = vmatprep.subr.bf16.mxu0 0
    %195 = vmatpush1.bf16.msra.mxu0 0
    %196 = vmatprep.subr.bf16.mxu0 0
    %197 = vmatpush1.bf16.msra.mxu0 0
    %198 = vmatprep.subr.bf16.mxu0 0
    %199 = vmatpush1.bf16.msra.mxu0 0
    %200 = vmatprep.subr.bf16.mxu0 0
    %201 = vmatpush1.bf16.msra.mxu0 0
    %202 = vmatprep.subr.bf16.mxu0 0
    %203 = vmatpush1.bf16.msra.mxu0 0
    %204 = vmatprep.subr.bf16.mxu0 0
    %205 = vmatpush1.bf16.msra.mxu0 0
    %206 = vmatprep.subr.bf16.mxu0 0
    %207 = vmatpush1.bf16.msra.mxu0 0
    %208 = vmatprep.subr.bf16.mxu0 0
    %209 = vmatpush1.bf16.msra.mxu0 0
    %210 = vmatprep.subr.bf16.mxu0 0
    %211 = vmatpush1.bf16.msra.mxu0 0
    %212 = vmatprep.subr.bf16.mxu0 0
    %213 = vmatpush1.bf16.msra.mxu0 0
    %214 = vmatprep.subr.bf16.mxu0 0
    %215 = vmatpush1.bf16.msra.mxu0 0
    %216 = vmatprep.mubr.bf16.mxu0 0
    %217 = vmatmul.mubr.bf16.gmra.mrb[0].mxu0 %v182
    %v218 = vpop.f32.mrb[0].mxu0
    %v219 = vadd.f32 %v156, %v218
    %v220 = vpop.f32.mrb[0].mxu0
    %v221 = vpop.f32.mrb[0].mxu0
    %v222 = vpop.f32.mrb[0].mxu0
    %223 = vdwg.mxu0
    %v224 = vld [vmem:[%s4 + $0x2] sm:$0xff]
    %v225 = vld [vmem:[%s4 + $0xa] sm:$0xff]
    %v226 = vld [vmem:[%s4 + $0x12] sm:$0xff]
    %v227 = vld [vmem:[%s4 + $0x1a] sm:$0xff]
    %v228 = vld [vmem:[%s4 + $0x22] sm:$0xff]
    %v229 = vld [vmem:[%s4 + $0x2a] sm:$0xff]
    %v230 = vld [vmem:[%s4 + $0x32] sm:$0xff]
    %v231 = vld [vmem:[%s4 + $0x3a] sm:$0xff]
    %v232 = vmul.f32 %v219, %v219
    %v234 = vrot.slane %v232, 6
    %vm236 = vcmask 1041408
    %v237 = vsel %vm236, %v219, %v234
    %v239 = vsel %vm28, %v237, 0
    %241 = vmatprep.subr.mxu0 0.0
    %242 = vmatpush1.msra.mxu0 %v224
    %243 = vmatprep.subr.mxu0 0.0
    %244 = vmatpush1.msra.mxu0 %v225
    %245 = vmatprep.subr.mxu0 0.0
    %246 = vmatpush1.msra.mxu0 %v226
    %247 = vmatprep.subr.mxu0 0.0
    %248 = vmatpush1.msra.mxu0 %v227
    %249 = vmatprep.subr.mxu0 0.0
    %250 = vmatpush1.msra.mxu0 %v228
    %251 = vmatprep.subr.mxu0 0.0
    %252 = vmatpush1.msra.mxu0 %v229
    %253 = vmatprep.subr.mxu0 0.0
    %254 = vmatpush1.msra.mxu0 %v230
    %255 = vmatprep.subr.mxu0 0.0
    %256 = vmatpush1.msra.mxu0 %v231
    %257 = vmatprep.subr.mxu0 0.0
    %258 = vmatpush1.msra.mxu0 0.0
    %259 = vmatprep.subr.mxu0 0.0
    %260 = vmatpush1.msra.mxu0 0.0
    %261 = vmatprep.subr.mxu0 0.0
    %262 = vmatpush1.msra.mxu0 0.0
    %263 = vmatprep.subr.mxu0 0.0
    %264 = vmatpush1.msra.mxu0 0.0
    %265 = vmatprep.subr.mxu0 0.0
    %266 = vmatpush1.msra.mxu0 0.0
    %267 = vmatprep.subr.mxu0 0.0
    %268 = vmatpush1.msra.mxu0 0.0
    %269 = vmatprep.subr.mxu0 0.0
    %270 = vmatpush1.msra.mxu0 0.0
    %271 = vmatprep.subr.mxu0 0.0
    %272 = vmatpush1.msra.mxu0 0.0
    %273 = vmatprep.subr.mxu0 0.0
    %274 = vmatpush1.msra.mxu0 0.0
    %275 = vmatprep.subr.mxu0 0.0
    %276 = vmatpush1.msra.mxu0 0.0
    %277 = vmatprep.subr.mxu0 0.0
    %278 = vmatpush1.msra.mxu0 0.0
    %279 = vmatprep.subr.mxu0 0.0
    %280 = vmatpush1.msra.mxu0 0.0
    %281 = vmatprep.subr.mxu0 0.0
    %282 = vmatpush1.msra.mxu0 0.0
    %283 = vmatprep.subr.mxu0 0.0
    %284 = vmatpush1.msra.mxu0 0.0
    %285 = vmatprep.subr.mxu0 0.0
    %286 = vmatpush1.msra.mxu0 0.0
    %287 = vmatprep.subr.mxu0 0.0
    %288 = vmatpush1.msra.mxu0 0.0
    %289 = vmatprep.subr.mxu0 0.0
    %290 = vmatpush1.msra.mxu0 0.0
    %291 = vmatprep.subr.mxu0 0.0
    %292 = vmatpush1.msra.mxu0 0.0
    %293 = vmatprep.subr.mxu0 0.0
    %294 = vmatpush1.msra.mxu0 0.0
    %295 = vmatprep.subr.mxu0 0.0
    %296 = vmatpush1.msra.mxu0 0.0
    %297 = vmatprep.subr.mxu0 0.0
    %298 = vmatpush1.msra.mxu0 0.0
    %299 = vmatprep.subr.mxu0 0.0
    %300 = vmatpush1.msra.mxu0 0.0
    %301 = vmatprep.subr.mxu0 0.0
    %302 = vmatpush1.msra.mxu0 0.0
    %303 = vmatprep.subr.mxu0 0.0
    %304 = vmatpush1.msra.mxu0 0.0
    %305 = vmatprep.mubr.f32.mxu0 0.0
    %306 = vmatmul.mubr.f32.gmra.mrb[0].mxu0 %v239
    %v307 = vpop.f32.mrb[0].mxu0
    %v308 = vadd.f32 0.0, %v307
    %v309 = vpop.f32.mrb[0].mxu0
    %310 = vdwg.mxu0
    %v311 = vmul.f32 %v308, %v308
    %v313 = vrot.slane %v311, 6
    %v315 = vsub.f32 %v308, %v313
    %v316 = vmax.f32 %v315, 0.0
    %v317 = vadd.f32 %v316, 1e-05
    %v318 = vrsqrt.pop %v317
    %v319 = vsub.f32 %v219, %v308
    %v321 = vrot.slane %v318, 2
    %v323 = vmul.f32 %v319, %v321
    %v324 = vmax.f32 %v323, 0.0
    %vm325 = vcmask 517120
    %326 = vst.msk [vmem:[#allocation2] sm:$0x3] %vm325, %v324
    %v329 = vunpack.c.l.s4 1983009808
    %v330 = vunpack.c.0.s8 %v329
    %v331 = vlaneseq
    %v332 = vshrl.u32 %v331, 7
    %v333 = vsub.s32 %v330, %v332
    %v334 = vrot.slane %v22, %v333
    %335 = vrot.lane.b32.xlu0 %v334, 64
    %v336 = vpop.permute.xlu0 %335
    %vm338 = vcmask 1041920
    %339 = vst.msk [vmem:[#allocation2] sm:$0x3] %vm338, %v336
    %340 = vst.msk [vmem:[#allocation2 + $0x2] sm:$0x3] %vm325, %v23
    // Predicated region
    $region22: #{tpu_custom_call.1} parent=1 // pred_check
      _
    $region23: #{tpu_custom_call.1} parent=1 // pred_check_branch
      %342 = sbr.rel (0) target = $region25
    $region24: #{tpu_custom_call.1} parent=1 // pred_region
      %s344 = ssub.s32 64, 64
      %345 = vsyncadd [#allocation3], %s344
      %s347 = sshll.u32 [#allocation2], 4
      %s348 = int_to_ptr.vmem [resolvable:$true] %s347
      %350 = dma.vmem_to_hbm [thread:$0]  %s348, 64, %s5, [#allocation3]
    $region25: #{tpu_custom_call.1} parent=1 // pred_fallthru
      _
    // Predicated region
    $region26: #{tpu_custom_call.1} parent=1 // pred_check
      _
    $region27: #{tpu_custom_call.1} parent=1 // pred_check_branch
      %352 = sbr.rel (0) target = $region29
    $region28: #{tpu_custom_call.1} parent=1 // pred_region
      %353 = dma.done [#allocation3], 64
    $region29: #{tpu_custom_call.1} parent=1 // pred_fallthru
      _
    %354 = vsyncpa [#allocation3], 1

</llo_original>
